<compile_context>
chip_gen: v7x
topology: tpu7x:2x2x1
jax: 0.10.0
libtpu: 0.0.40
codegen_flags: <defaults>
</compile_context>

<pallas_src>
import functools
import math

import jax
import jax.numpy as jnp
from jax.experimental import pallas as pl
from jax.experimental.pallas import tpu as pltpu


# --------------------------- tiling policy ----------------------------------
_TILE_BYTES = 1 << 20        # ~1 MiB soft target per input block
_MAX_BLOCK_BYTES = 2 << 20   # hard cap: 2*(in+out) double-buffered stays << VMEM
_MIN_GRID_STEPS = 4          # keep the DMA pipeline busy / allow megacore sharding


def _pick_row_block(n_rows, row_bytes):
    """Rows per block for a (rows, ...) slab whose per-row slab is `row_bytes`."""
    row_bytes = max(1, int(row_bytes))
    tm = max(1, _TILE_BYTES // row_bytes)
    tm = min(tm, n_rows)
    if tm >= 8:
        tm = (tm // 8) * 8                              # sublane-aligned tiles
        if n_rows >= 8 * _MIN_GRID_STEPS:               # ensure >= 4 grid steps
            tm = min(tm, max(8, (pl.cdiv(n_rows, _MIN_GRID_STEPS) // 8) * 8))
    elif tm < n_rows:
        return None                                     # would need sub-8-row tiles
    if tm * row_bytes > _MAX_BLOCK_BYTES:
        return None                                     # single row blows the budget
    return tm


# --------------------------- kernels -----------------------------------------
def _l2norm_lastdim_kernel(x_ref, o_ref, *, eps, groups, seg_len):
    """Normalize each length-`seg_len` segment of every row over the lane axis."""
    x = x_ref[...].astype(jnp.float32)                  # (tm, groups*seg_len)
    xsq = x * x
    if groups == 1:
        ss = jnp.sum(xsq, axis=-1, keepdims=True)       # (tm, 1) lane reduce
        inv = 1.0 / jnp.maximum(jnp.sqrt(ss), jnp.float32(eps))
        o_ref[...] = (x * inv).astype(o_ref.dtype)
    else:
        # Segmented reduce: per-row layout is `groups` logical rows of length
        # `seg_len` packed lane-dense. Masked full-lane reduces + selects only
        # (VPU/XLU slack in an HBM-bound kernel); exact f32, no matmul/reshape.
        lane = jax.lax.broadcasted_iota(jnp.int32, x.shape, 1)
        seg_id = lane // seg_len
        inv_full = jnp.zeros_like(x)
        for j in range(groups):
            m = seg_id == j
            ssj = jnp.sum(jnp.where(m, xsq, 0.0), axis=-1, keepdims=True)  # (tm,1)
            invj = 1.0 / jnp.maximum(jnp.sqrt(ssj), jnp.float32(eps))
            inv_full = jnp.where(m, invj, inv_full)
        o_ref[...] = (x * inv_full).astype(o_ref.dtype)


def _l2norm_middim_kernel(x_ref, o_ref, *, eps):
    """Normalize over the middle axis of a (tp, D, S) block (sublane reduce)."""
    x = x_ref[...].astype(jnp.float32)                  # (tp, D, S)
    ss = jnp.sum(x * x, axis=1, keepdims=True)          # (tp, 1, S)
    inv = 1.0 / jnp.maximum(jnp.sqrt(ss), jnp.float32(eps))
    o_ref[...] = (x * inv).astype(o_ref.dtype)


def _sumsq_kernel(x_ref, o_ref, *, n_rows, block_rows):
    """Accumulate the global sum of squares across the grid into a (1,1) output."""
    i = pl.program_id(0)

    @pl.when(i == 0)
    def _():
        o_ref[...] = jnp.zeros_like(o_ref)

    x = x_ref[...].astype(jnp.float32)                  # (tm, C)
    # Mask rows past the true extent (ragged last block reads undefined data).
    row = i * block_rows + jax.lax.broadcasted_iota(jnp.int32, x.shape, 0)
    xsq = jnp.where(row < n_rows, x * x, 0.0)
    part = jnp.sum(xsq, axis=1, keepdims=True)          # (tm, 1) lane reduce
    part = jnp.sum(part, axis=0, keepdims=True)         # (1, 1) sublane reduce
    o_ref[...] += part


def _scale_kernel(inv_ref, x_ref, o_ref):
    """o = x * inv (inv is a (1,1) f32 scalar block)."""
    o_ref[...] = (x_ref[...].astype(jnp.float32) * inv_ref[...]).astype(o_ref.dtype)


# --------------------------- pallas_call wrappers -----------------------------
def _l2norm_lastdim(x2d, eps):
    R, D = x2d.shape
    itemsize = jnp.dtype(x2d.dtype).itemsize
    groups, seg_len = 1, D
    # Lane-dense packing for small reduction widths: view (R, D) as (R/g, g*D)
    # with g*D a multiple of 128; normalize each length-D segment in-kernel.
    if 0 < D < 128:
        g = 128 // math.gcd(D, 128)
        if 2 <= g <= 16 and R % g == 0:
            groups, seg_len = g, D
            x2d = x2d.reshape(R // g, g * D)
            R, D = x2d.shape
    tm = _pick_row_block(R, D * itemsize)
    if tm is None:
        return None
    grid = (pl.cdiv(R, tm),)
    kernel = functools.partial(_l2norm_lastdim_kernel, eps=float(eps),
                               groups=groups, seg_len=seg_len)
    cost = pl.CostEstimate(flops=3 * R * D, transcendentals=R * groups,
                           bytes_accessed=2 * R * D * itemsize)
    return pl.pallas_call(
        kernel,
        out_shape=jax.ShapeDtypeStruct((R, D), x2d.dtype),
        grid_spec=pltpu.PrefetchScalarGridSpec(
            num_scalar_prefetch=0, grid=grid,
            in_specs=[pl.BlockSpec((tm, D), lambda i: (i, 0))],
            out_specs=pl.BlockSpec((tm, D), lambda i: (i, 0)),
        ),
        compiler_params=pltpu.CompilerParams(dimension_semantics=("parallel",)),
        cost_estimate=cost,
    )(x2d)


def _l2norm_middim(x3d, eps):
    P, D, S = x3d.shape
    itemsize = jnp.dtype(x3d.dtype).itemsize
    tm = _pick_row_block(P, D * S * itemsize)
    if tm is None:
        return None
    grid = (pl.cdiv(P, tm),)
    cost = pl.CostEstimate(flops=3 * P * D * S, transcendentals=P * S,
                           bytes_accessed=2 * P * D * S * itemsize)
    return pl.pallas_call(
        functools.partial(_l2norm_middim_kernel, eps=float(eps)),
        out_shape=jax.ShapeDtypeStruct((P, D, S), x3d.dtype),
        grid_spec=pltpu.PrefetchScalarGridSpec(
            num_scalar_prefetch=0, grid=grid,
            in_specs=[pl.BlockSpec((tm, D, S), lambda i: (i, 0, 0))],
            out_specs=pl.BlockSpec((tm, D, S), lambda i: (i, 0, 0)),
        ),
        compiler_params=pltpu.CompilerParams(dimension_semantics=("parallel",)),
        cost_estimate=cost,
    )(x3d)


def _global_2d_view(x):
    """Lane-dense 2-D metadata view of the flattened tensor (no data movement)."""
    N = x.size
    best = None
    for C in (4096, 2048, 1024, 512, 256, 128):
        if N % C == 0:
            if N // C >= 8:
                return x.reshape(N // C, C)
            if best is None:
                best = C
    if best is not None:
        return x.reshape(N // best, best)
    if x.ndim >= 2:
        return x.reshape(-1, x.shape[-1])
    return x.reshape(1, N)


def _l2norm_global(x, eps):
    x2d = _global_2d_view(x)
    R, C = x2d.shape
    itemsize = jnp.dtype(x2d.dtype).itemsize
    tm = _pick_row_block(R, C * itemsize)
    if tm is None:
        return None
    grid = (pl.cdiv(R, tm),)

    # Pass 1: streaming global sum of squares (grid reduction, output resident).
    ss = pl.pallas_call(
        functools.partial(_sumsq_kernel, n_rows=R, block_rows=tm),
        out_shape=jax.ShapeDtypeStruct((1, 1), jnp.float32),
        grid_spec=pltpu.PrefetchScalarGridSpec(
            num_scalar_prefetch=0, grid=grid,
            in_specs=[pl.BlockSpec((tm, C), lambda i: (i, 0))],
            out_specs=pl.BlockSpec((1, 1), lambda i: (0, 0)),
        ),
        compiler_params=pltpu.CompilerParams(dimension_semantics=("arbitrary",)),
        cost_estimate=pl.CostEstimate(flops=2 * R * C, transcendentals=0,
                                      bytes_accessed=R * C * itemsize + 4),
    )(x2d)
    inv = (1.0 / jnp.maximum(jnp.sqrt(ss), jnp.float32(eps))).astype(jnp.float32)

    # Pass 2: streaming scale by the single reciprocal.
    y2d = pl.pallas_call(
        _scale_kernel,
        out_shape=jax.ShapeDtypeStruct((R, C), x2d.dtype),
        grid_spec=pltpu.PrefetchScalarGridSpec(
            num_scalar_prefetch=0, grid=grid,
            in_specs=[pl.BlockSpec((1, 1), lambda i: (0, 0)),
                      pl.BlockSpec((tm, C), lambda i: (i, 0))],
            out_specs=pl.BlockSpec((tm, C), lambda i: (i, 0)),
        ),
        compiler_params=pltpu.CompilerParams(dimension_semantics=("parallel",)),
        cost_estimate=pl.CostEstimate(flops=R * C, transcendentals=0,
                                      bytes_accessed=2 * R * C * itemsize),
    )(inv, x2d)
    return y2d.reshape(x.shape)


def _l2norm_jnp(x, dim, eps):
    ss = jnp.sum(jnp.square(x.astype(jnp.float32)), axis=dim,
                 keepdims=dim is not None)
    denom = jnp.maximum(jnp.sqrt(ss), jnp.float32(eps))
    return (x.astype(jnp.float32) / denom).astype(x.dtype)


# ------------------------- module wrapper -----------------------------------
class L2NormPallas:
    """Pallas implementation of L2Norm(dim, eps): x / ||x||_2.clamp(min=eps)."""

    def __init__(self, dim=None, eps=1e-12):
        self.dim = dim
        self.eps = float(eps)

    def __call__(self, x):
        eps = self.eps
        if self.dim is None:
            y = _l2norm_global(x, eps)
            return y if y is not None else _l2norm_jnp(x, None, eps)

        dim = self.dim % x.ndim
        prefix = math.prod(x.shape[:dim])
        d = x.shape[dim]
        suffix = math.prod(x.shape[dim + 1:])
        if suffix == 1:                              # reducing the (effective) last axis
            y = _l2norm_lastdim(x.reshape(prefix, d), eps)
        else:                                        # contiguous (prefix, d, suffix) view
            y = _l2norm_middim(x.reshape(prefix, d, suffix), eps)
        if y is None:
            # TODO(synk): reduction slabs larger than the VMEM tile budget fall back
            # to XLA; a chunked two-pass Pallas kernel would be needed for those.
            return _l2norm_jnp(x, dim, eps)
        return y.reshape(x.shape)


# ------------------------------ self-test ------------------------------------
if __name__ == "__main__":
    key = jax.random.PRNGKey(0)
    k1, k2 = jax.random.split(key)
    x = jax.random.normal(k1, (2, 4, 16, 16), dtype=jnp.float32)

    def ref(t, dim, eps=1e-12):
        if dim is None:
            n = jnp.sqrt(jnp.sum(jnp.square(t)))
        else:
            n = jnp.sqrt(jnp.sum(jnp.square(t), axis=dim, keepdims=True))
        return t / jnp.maximum(n, eps)

    # Global norm (module default), every axis, and negative-axis form.
    for dim in (None, 0, 1, 2, 3, -1):
        out = jax.block_until_ready(L2NormPallas(dim=dim)(x))
        assert out.shape == x.shape and out.dtype == x.dtype, dim
        r = ref(x, dim)
        err = float(jnp.max(jnp.abs(out - r)))
        assert jnp.allclose(out, r, atol=3e-5, rtol=3e-5), (dim, err)

    # Ragged row tiling + non-multiple-of-128 last dim (no packing path).
    y = jax.random.normal(k2, (300, 160), dtype=jnp.float32)
    for dim in (0, 1):
        out = jax.block_until_ready(L2NormPallas(dim=dim)(y))
        r = ref(y, dim)
        err = float(jnp.max(jnp.abs(out - r)))
        assert jnp.allclose(out, r, atol=3e-5, rtol=3e-5), (dim, err)

    # eps-clamp path: an all-zero row must map to zeros (0 / eps).
    xz = x.at[0, 0, 0, :].set(0.0)
    outz = jax.block_until_ready(L2NormPallas(dim=-1)(xz))
    assert jnp.allclose(outz[0, 0, 0, :], 0.0)

    print("KERNEL_OK")
</pallas_src>

<mosaic_0001>
module attributes {stable_mosaic.version = 11 : i64} {
  func.func @_sumsq_kernel(%arg0: i32, %arg1: memref<8x256xf32, #tpu.memory_space<vmem>>, %arg2: memref<1x1xf32, #tpu.memory_space<vmem>>) attributes {dimension_semantics = [#tpu.dimension_semantics<arbitrary>], iteration_bounds = array<i64: 1>, scalar_prefetch = 0 : i64, scratch_operands = 0 : i64, tpu.core_type = #tpu.core_type<tc>, window_params = [{transform_indices = @transform_0, window_bounds = array<i64: 8, 256>}, {pipeline_mode = #tpu.pipeline_mode<synchronous>, transform_indices = @transform_1, window_bounds = array<i64: 1, 1>}]} {
    %c0_i32 = arith.constant 0 : i32
    %0 = arith.cmpi eq, %arg0, %c0_i32 : i32
    %1 = arith.extui %0 : i1 to i32
    %c0_i32_0 = arith.constant 0 : i32
    %2 = arith.cmpi ne, %1, %c0_i32_0 : i32
    scf.if %2 {
      %cst_9 = arith.constant 0.000000e+00 : f32
      %20 = vector.broadcast %cst_9 : f32 to vector<1x1xf32>
      %c0_10 = arith.constant 0 : index
      %c0_11 = arith.constant 0 : index
      %21 = vector.load %arg2[%c0_10, %c0_11] : memref<1x1xf32, #tpu.memory_space<vmem>>, vector<1x1xf32>
      tpu.vector_store %arg2[%c0_10, %c0_11], %20 {strides = array<i32>} : memref<1x1xf32, #tpu.memory_space<vmem>>, vector<1x1xf32>,
    } else {
    }
    %c0 = arith.constant 0 : index
    %c0_1 = arith.constant 0 : index
    %3 = vector.load %arg1[%c0, %c0_1] : memref<8x256xf32, #tpu.memory_space<vmem>>, vector<8x256xf32>
    %c8_i32 = arith.constant 8 : i32
    %4 = arith.muli %arg0, %c8_i32 : i32
    %5 = tpu.iota {dimensions = array<i32: 0>} : vector<8x256xi32>
    %6 = vector.broadcast %4 : i32 to vector<8x256xi32>
    %7 = arith.addi %6, %5 : vector<8x256xi32>
    %c8_i32_2 = arith.constant 8 : i32
    %8 = vector.broadcast %c8_i32_2 : i32 to vector<8x256xi32>
    %9 = arith.cmpi slt, %7, %8 : vector<8x256xi32>
    %10 = arith.mulf %3, %3 : vector<8x256xf32>
    %cst = arith.constant 0.000000e+00 : f32
    %11 = vector.broadcast %cst : f32 to vector<8x256xf32>
    %12 = arith.select %9, %10, %11 : vector<8x256xi1>, vector<8x256xf32>
    %cst_3 = arith.constant dense<0.000000e+00> : vector<8xf32>
    %13 = vector.multi_reduction <add>, %12, %cst_3 [1] : vector<8x256xf32> to vector<8xf32>
    %14 = vector.shape_cast %13 : vector<8xf32> to vector<8x1xf32>
    %cst_4 = arith.constant dense<0.000000e+00> : vector<1xf32>
    %15 = vector.multi_reduction <add>, %14, %cst_4 [0] : vector<8x1xf32> to vector<1xf32>
    %16 = vector.shape_cast %15 : vector<1xf32> to vector<1x1xf32>
    %c0_5 = arith.constant 0 : index
    %c0_6 = arith.constant 0 : index
    %17 = vector.load %arg2[%c0_5, %c0_6] : memref<1x1xf32, #tpu.memory_space<vmem>>, vector<1x1xf32>
    %18 = arith.addf %17, %16 : vector<1x1xf32>
    %c0_7 = arith.constant 0 : index
    %c0_8 = arith.constant 0 : index
    %19 = vector.load %arg2[%c0_7, %c0_8] : memref<1x1xf32, #tpu.memory_space<vmem>>, vector<1x1xf32>
    tpu.vector_store %arg2[%c0_7, %c0_8], %18 {strides = array<i32>} : memref<1x1xf32, #tpu.memory_space<vmem>>, vector<1x1xf32>,
    return
  }
  func.func @transform_0(%arg0: i32) -> (i32, i32) {
    %c0_i32 = arith.constant 0 : i32
    %c0_i32_0 = arith.constant 0 : i32
    return %arg0, %c0_i32 : i32, i32
  }
  func.func @transform_1(%arg0: i32) -> (i32, i32) {
    %c0_i32 = arith.constant 0 : i32
    %c0_i32_0 = arith.constant 0 : i32
    %c0_i32_1 = arith.constant 0 : i32
    return %c0_i32, %c0_i32_0 : i32, i32
  }
}

</mosaic_0001>

<llo_original>
// kernel: tpu_custom_call.1
$region0: #{tpu_custom_call.1}
  #allocation0 [shape = 'u32[]', space=smem, size = 0x4, offset = 0x4, fixed_abs, tag = 'smem constant byte address 0x4 - core index']
  #allocation1 [shape = 'u32[144,128]{1,0:T(1,128)}', space=vmem, size = 0x12000, scoped, tag = 'internal scratch']
  %s0 = inlined_call_operand.hbm [shape: f32[8,256], index: 0, kind: input, shape index: {}]
  %s1 = inlined_call_operand.hbm [shape: f32[1,1], index: 1, kind: output, shape index: {}]
  %s2 = sld [smem:[#allocation0]]
  $region22: #{tpu_custom_call.1} parent=0
    _
  %s4 = ssub.s32 1, %s2
  %s5 = scalar_select 0, %s4, %s2
  $region1: #{tpu_custom_call.1} parent=0
    #allocation2 [shape = 'u8[8192]{0}', space=vmem, size = 0x2000, scoped, tag = 'input window, operand 0, single buffered']
    #allocation3 [shape = 's32[1]{0}', space=sflag, size = 0x4, scoped, tag = 'scoped memory for tpu_custom_call.1']
    #allocation4 [shape = 's32[1]{0}', space=sflag, size = 0x4, scoped, tag = 'scoped memory for tpu_custom_call.1']
    #allocation5 [shape = 'u8[512]{0}', space=vmem, size = 0x400, scoped, tag = 'output window, operand 0, single buffered']
    %6 = vsyncpa [#allocation3], 0
    %7 = vsyncpa [#allocation4], 0
    // Predicated region
    $region2: #{tpu_custom_call.1} parent=1 // pred_check
      _
    $region3: #{tpu_custom_call.1} parent=1 // pred_check_branch
      %9 = sbr.rel (0) target = $region5
    $region4: #{tpu_custom_call.1} parent=1 // pred_region
      %s11 = ssub.s32 256, 256
      %12 = vsyncadd [#allocation3], %s11
      %s14 = sshll.u32 [#allocation2], 4
      %s15 = int_to_ptr.vmem [resolvable:$true] %s14
      %17 = dma.hbm_to_vmem [thread:$0]  %s0, 256, %s15, [#allocation3]
    $region5: #{tpu_custom_call.1} parent=1 // pred_fallthru
      _
    // Predicated region
    $region6: #{tpu_custom_call.1} parent=1 // pred_check
      _
    $region7: #{tpu_custom_call.1} parent=1 // pred_check_branch
      %19 = sbr.rel (0) target = $region9
    $region8: #{tpu_custom_call.1} parent=1 // pred_region
      %20 = dma.done [#allocation3], 256
    $region9: #{tpu_custom_call.1} parent=1 // pred_fallthru
      _
    %p21 = scmp.eq.s32.totalorder 0, 0
    // Predicated region
    $region10: #{tpu_custom_call.1} parent=1 // pred_check
      %p22 = pneg %p21
    $region11: #{tpu_custom_call.1} parent=1 // pred_check_branch
      %24 = sbr.rel (%p22) target = $region13
    $region12: #{tpu_custom_call.1} parent=1 // pred_region
      %vm25 = vcmask 0
      %26 = vst.msk [vmem:[#allocation5] sm:$0x1] %vm25, 0.0
    $region13: #{tpu_custom_call.1} parent=1 // pred_fallthru
      _
    %v27 = vld [vmem:[#allocation2] sm:$0xff]
    %v28 = vld [vmem:[#allocation2 + $0x8] sm:$0xff]
    %s29 = smul.u32 0, 8
    %v30 = vlaneseq
    %v31 = vshrl.u32 %v30, 7
    %v32 = vstv %s29
    %v33 = vadd.s32 %v32, %v31
    %vm34 = vcmp.lt.s32.totalorder %v33, 8
    %v35 = vmul.f32 %v27, %v27
    %v36 = vmul.f32 %v28, %v28
    %v37 = vsel %vm34, %v35, 0.0
    %v38 = vsel %vm34, %v36, 0.0
    %v39 = vadd.f32 %v37, %v38
    %40 = vadd.xlane.f32.xlu0 %v39
    %v41 = vpop.xlane.xlu0 %40
    %v42 = vrot.slane %v41, 4
    %v43 = vadd.f32 %v41, %v42
    %v44 = vrot.slane %v43, 2
    %v45 = vadd.f32 %v43, %v44
    %v46 = vrot.slane %v45, 1
    %v47 = vadd.f32 %v45, %v46
    %v48 = vld [vmem:[#allocation5] sm:$0x1]
    %v49 = vadd.f32 %v48, %v47
    %vm50 = vcmask 0
    %51 = vst.msk [vmem:[#allocation5] sm:$0x1] %vm50, %v49
    // Predicated region
    $region14: #{tpu_custom_call.1} parent=1 // pred_check
      _
    $region15: #{tpu_custom_call.1} parent=1 // pred_check_branch
      %53 = sbr.rel (0) target = $region17
    $region16: #{tpu_custom_call.1} parent=1 // pred_region
      %s55 = ssub.s32 16, 16
      %56 = vsyncadd [#allocation4], %s55
      %s58 = sshll.u32 [#allocation5], 4
      %s59 = int_to_ptr.vmem [resolvable:$true] %s58
      %61 = dma.vmem_to_hbm [thread:$0]  %s59, 16, %s1, [#allocation4]
    $region17: #{tpu_custom_call.1} parent=1 // pred_fallthru
      _
    // Predicated region
    $region18: #{tpu_custom_call.1} parent=1 // pred_check
      _
    $region19: #{tpu_custom_call.1} parent=1 // pred_check_branch
      %63 = sbr.rel (0) target = $region21
    $region20: #{tpu_custom_call.1} parent=1 // pred_region
      %64 = dma.done [#allocation4], 16
    $region21: #{tpu_custom_call.1} parent=1 // pred_fallthru
      _
    %65 = vsyncpa [#allocation3], 1
    %66 = vsyncpa [#allocation4], 1

</llo_original>
